<compile_context>
chip_gen: v6e
topology: v6e:2x2x1
jax: 0.10.0
libtpu: 0.0.40
codegen_flags: <defaults>
</compile_context>

<pallas_src>
import jax
import jax.numpy as jnp
from jax.experimental import pallas as pl
from jax.experimental.pallas import tpu as pltpu


# ----------------------------------------------------------------------------
# Pallas kernel: one-hot lerp-select -> (S @ emb_w1 + b1) -> SiLU -> (@ W2 + b2) -> SiLU
# ----------------------------------------------------------------------------
def _diffusion_embedding_kernel(low_ref, high_ref, frac_ref,   # VMEM [B,1]
                                ew1_ref,                       # VMEM [Tpad,512] bf16
                                b1_ref,                        # VMEM [1,512]  f32
                                w2_ref,                        # VMEM [512,512] bf16
                                b2_ref,                        # VMEM [1,512]  f32
                                o_ref):                        # VMEM [B,512]  f32
    B = o_ref.shape[0]
    t_pad = ew1_ref.shape[0]

    # Selection / lerp matrix S[B, Tpad]:
    #   S[i, low[i]]  += 1 - frac[i]
    #   S[i, high[i]] += frac[i]
    # (when low == high the two terms sum to 1.0, matching the lerp exactly).
    iota = jax.lax.broadcasted_iota(jnp.int32, (B, t_pad), 1)
    lo = low_ref[...]                     # [B,1] i32
    hi = high_ref[...]                    # [B,1] i32
    frac = frac_ref[...]                  # [B,1] f32
    sel = (jnp.where(iota == lo, 1.0 - frac, 0.0)
           + jnp.where(iota == hi, frac, 0.0))                  # [B,Tpad] f32

    # First projection fused with the embedding gather: S @ (emb @ W1) + b1.
    h = jnp.dot(sel.astype(jnp.bfloat16), ew1_ref[...],
                preferred_element_type=jnp.float32)             # [B,512] f32
    h = h + b1_ref[...]
    h = h * jax.nn.sigmoid(h)                                   # SiLU (EUP)

    # Second projection.
    y = jnp.dot(h.astype(jnp.bfloat16), w2_ref[...],
                preferred_element_type=jnp.float32)             # [B,512] f32
    y = y + b2_ref[...]
    o_ref[...] = y * jax.nn.sigmoid(y)                          # SiLU


@jax.jit
def _diffusion_embedding_forward(low_idx, high_idx, frac, emb_w1, b1, w2, b2):
    B = low_idx.shape[0]
    t_pad = emb_w1.shape[0]
    return pl.pallas_call(
        _diffusion_embedding_kernel,
        out_shape=jax.ShapeDtypeStruct((B, 512), jnp.float32),
        in_specs=[
            pl.BlockSpec((B, 1), lambda: (0, 0)),        # low_idx  [B,1] i32
            pl.BlockSpec((B, 1), lambda: (0, 0)),        # high_idx [B,1] i32
            pl.BlockSpec((B, 1), lambda: (0, 0)),        # frac     [B,1] f32
            pl.BlockSpec((t_pad, 512), lambda: (0, 0)),  # emb @ W1 (bf16)
            pl.BlockSpec((1, 512), lambda: (0, 0)),      # b1 (f32)
            pl.BlockSpec((512, 512), lambda: (0, 0)),    # w2 (bf16)
            pl.BlockSpec((1, 512), lambda: (0, 0)),      # b2 (f32)
        ],
        out_specs=pl.BlockSpec((B, 512), lambda: (0, 0)),
    )(low_idx, high_idx, frac, emb_w1, b1, w2, b2)


# ----------------------------------------------------------------------------
# DiffusionEmbedding module (JAX / Pallas)
# ----------------------------------------------------------------------------
class DiffusionEmbedding:
    def __init__(self, max_steps, key):
        self.max_steps = max_steps
        emb = self._build_embedding(max_steps)                   # [T, 128] f32
        self.embedding = emb

        # Pad rows to a multiple of 128 so the one-hot contraction dim is
        # lane-dense; padded rows are zero and never selected (indices are
        # clamped below max_steps).
        t_pad = ((max_steps + 127) // 128) * 128
        emb_padded = jnp.concatenate(
            [emb, jnp.zeros((t_pad - max_steps, 128), jnp.float32)], axis=0)

        k1, k2, k3, k4 = jax.random.split(key, 4)
        # Deterministic synthetic init (PyTorch Linear-like uniform bounds),
        # stored as [in, out] so the kernel does x @ W.  f32 masters are kept
        # for the reference check.
        bound1 = 1.0 / jnp.sqrt(128.0)
        bound2 = 1.0 / jnp.sqrt(512.0)
        self.w1 = jax.random.uniform(k1, (128, 512), jnp.float32, -bound1, bound1)
        self.b1 = jax.random.uniform(k2, (1, 512), jnp.float32, -bound1, bound1)
        self.w2 = jax.random.uniform(k3, (512, 512), jnp.float32, -bound2, bound2)
        self.b2 = jax.random.uniform(k4, (1, 512), jnp.float32, -bound2, bound2)

        # Fold the embedding table into the first projection offline.
        self._emb_w1_bf16 = (emb_padded @ self.w1).astype(jnp.bfloat16)  # [Tpad,512]
        self._w2_bf16 = self.w2.astype(jnp.bfloat16)

    @staticmethod
    def _build_embedding(max_steps):
        steps = jnp.arange(max_steps, dtype=jnp.float32)[:, None]         # [T, 1]
        dims = jnp.arange(64, dtype=jnp.float32)[None, :]                 # [1, 64]
        table = steps * 10.0 ** (dims * 4.0 / 63.0)                       # [T, 64]
        return jnp.concatenate([jnp.sin(table), jnp.cos(table)], axis=1)  # [T, 128]

    def __call__(self, diffusion_step):
        t_max = self.max_steps - 1
        if jnp.issubdtype(diffusion_step.dtype, jnp.integer):
            idx = jnp.clip(diffusion_step.astype(jnp.int32), 0, t_max)
            low_idx = idx
            high_idx = idx
            frac = jnp.zeros(idx.shape, jnp.float32)
        else:
            t = diffusion_step.astype(jnp.float32)
            low = jnp.floor(t)
            low_idx = jnp.clip(low.astype(jnp.int32), 0, t_max)
            high_idx = jnp.clip(jnp.ceil(t).astype(jnp.int32), 0, t_max)
            frac = t - low
        B = low_idx.shape[0]
        return _diffusion_embedding_forward(
            low_idx.reshape(B, 1), high_idx.reshape(B, 1), frac.reshape(B, 1),
            self._emb_w1_bf16, self.b1, self._w2_bf16, self.b2)           # [B, 512]


# ----------------------------------------------------------------------------
# Pure-JAX f32 reference for correctness check (bf16 weights in the kernel ->
# relaxed tolerance).
# ----------------------------------------------------------------------------
def _reference(mod, diffusion_step):
    if jnp.issubdtype(diffusion_step.dtype, jnp.integer):
        x = mod.embedding[diffusion_step]
    else:
        low_idx = jnp.floor(diffusion_step).astype(jnp.int32)
        high_idx = jnp.ceil(diffusion_step).astype(jnp.int32)
        low = mod.embedding[low_idx]
        high = mod.embedding[high_idx]
        x = low + (high - low) * (diffusion_step - low_idx.astype(jnp.float32))[:, None]
    h = x @ mod.w1 + mod.b1
    h = h * jax.nn.sigmoid(h)
    y = h @ mod.w2 + mod.b2
    return y * jax.nn.sigmoid(y)


if __name__ == "__main__":
    key = jax.random.PRNGKey(0)
    max_steps = 50
    mod = DiffusionEmbedding(max_steps, key)

    # Integer diffusion steps (index path), batch of 8 (sublane-aligned).
    step_key = jax.random.fold_in(key, 1)
    diffusion_step = jax.random.randint(step_key, (8,), 0, max_steps, dtype=jnp.int32)

    out = jax.block_until_ready(mod(diffusion_step))
    ref = _reference(mod, diffusion_step)
    assert out.shape == (8, 512), out.shape
    assert jnp.allclose(out, ref, atol=3e-2, rtol=3e-2), float(jnp.abs(out - ref).max())

    # Float diffusion steps (lerp path).
    t = jnp.linspace(0.3, float(max_steps - 1) - 0.3, 8, dtype=jnp.float32)
    out_f = jax.block_until_ready(mod(t))
    ref_f = _reference(mod, t)
    assert jnp.allclose(out_f, ref_f, atol=3e-2, rtol=3e-2), float(jnp.abs(out_f - ref_f).max())

    print("KERNEL_OK")
</pallas_src>

<mosaic_0001>
module attributes {stable_mosaic.version = 11 : i64} {
  func.func @_diffusion_embedding_kernel(%arg0: memref<8x1xi32, #tpu.memory_space<vmem>>, %arg1: memref<8x1xi32, #tpu.memory_space<vmem>>, %arg2: memref<8x1xf32, #tpu.memory_space<vmem>>, %arg3: memref<128x512xbf16, #tpu.memory_space<vmem>>, %arg4: memref<1x512xf32, #tpu.memory_space<vmem>>, %arg5: memref<512x512xbf16, #tpu.memory_space<vmem>>, %arg6: memref<1x512xf32, #tpu.memory_space<vmem>>, %arg7: memref<8x512xf32, #tpu.memory_space<vmem>>) attributes {dimension_semantics = [], scalar_prefetch = 0 : i64, scratch_operands = 0 : i64, tpu.core_type = #tpu.core_type<tc>} {
    %0 = tpu.iota {dimensions = array<i32: 1>} : vector<8x128xi32>
    %c0 = arith.constant 0 : index
    %c0_0 = arith.constant 0 : index
    %1 = vector.load %arg0[%c0, %c0_0] : memref<8x1xi32, #tpu.memory_space<vmem>>, vector<8x1xi32>
    %c0_1 = arith.constant 0 : index
    %c0_2 = arith.constant 0 : index
    %2 = vector.load %arg1[%c0_1, %c0_2] : memref<8x1xi32, #tpu.memory_space<vmem>>, vector<8x1xi32>
    %c0_3 = arith.constant 0 : index
    %c0_4 = arith.constant 0 : index
    %3 = vector.load %arg2[%c0_3, %c0_4] : memref<8x1xf32, #tpu.memory_space<vmem>>, vector<8x1xf32>
    %4 = vector.broadcast %1 : vector<8x1xi32> to vector<8x128xi32>
    %5 = arith.cmpi eq, %0, %4 : vector<8x128xi32>
    %cst = arith.constant 1.000000e+00 : f32
    %6 = vector.broadcast %cst : f32 to vector<8x1xf32>
    %7 = arith.subf %6, %3 : vector<8x1xf32>
    %cst_5 = arith.constant 0.000000e+00 : f32
    %8 = vector.shape_cast %7 : vector<8x1xf32> to vector<8x1xf32>
    %9 = vector.broadcast %8 : vector<8x1xf32> to vector<8x128xf32>
    %10 = vector.broadcast %cst_5 : f32 to vector<8x128xf32>
    %11 = arith.select %5, %9, %10 : vector<8x128xi1>, vector<8x128xf32>
    %12 = vector.broadcast %2 : vector<8x1xi32> to vector<8x128xi32>
    %13 = arith.cmpi eq, %0, %12 : vector<8x128xi32>
    %cst_6 = arith.constant 0.000000e+00 : f32
    %14 = vector.shape_cast %3 : vector<8x1xf32> to vector<8x1xf32>
    %15 = vector.broadcast %14 : vector<8x1xf32> to vector<8x128xf32>
    %16 = vector.broadcast %cst_6 : f32 to vector<8x128xf32>
    %17 = arith.select %13, %15, %16 : vector<8x128xi1>, vector<8x128xf32>
    %18 = arith.addf %11, %17 : vector<8x128xf32>
    %19 = arith.truncf %18 : vector<8x128xf32> to vector<8x128xbf16>
    %c0_7 = arith.constant 0 : index
    %c0_8 = arith.constant 0 : index
    %20 = vector.load %arg3[%c0_7, %c0_8] : memref<128x512xbf16, #tpu.memory_space<vmem>>, vector<128x512xbf16>
    %cst_9 = arith.constant dense<0.000000e+00> : vector<8x512xf32>
    %21 = tpu.matmul %19, %20, %cst_9 {dimension_numbers = #tpu.dot_dimension_numbers<[1], [0], [0], [1], [0, 0, 1, 1], [], []>} : vector<8x128xbf16>, vector<128x512xbf16>, vector<8x512xf32> -> vector<8x512xf32>
    %c0_10 = arith.constant 0 : index
    %c0_11 = arith.constant 0 : index
    %22 = vector.load %arg4[%c0_10, %c0_11] : memref<1x512xf32, #tpu.memory_space<vmem>>, vector<1x512xf32>
    %23 = vector.broadcast %22 : vector<1x512xf32> to vector<8x512xf32>
    %24 = arith.addf %21, %23 : vector<8x512xf32>
    %25 = arith.negf %24 : vector<8x512xf32>
    %26 = math.exp %25 : vector<8x512xf32>
    %cst_12 = arith.constant 1.000000e+00 : f32
    %27 = vector.broadcast %cst_12 : f32 to vector<8x512xf32>
    %28 = arith.addf %27, %26 : vector<8x512xf32>
    %29 = arith.divf %27, %28 : vector<8x512xf32>
    %30 = arith.mulf %24, %29 : vector<8x512xf32>
    %31 = arith.truncf %30 : vector<8x512xf32> to vector<8x512xbf16>
    %c0_13 = arith.constant 0 : index
    %c0_14 = arith.constant 0 : index
    %32 = vector.load %arg5[%c0_13, %c0_14] : memref<512x512xbf16, #tpu.memory_space<vmem>>, vector<512x512xbf16>
    %cst_15 = arith.constant dense<0.000000e+00> : vector<8x512xf32>
    %33 = tpu.matmul %31, %32, %cst_15 {dimension_numbers = #tpu.dot_dimension_numbers<[1], [0], [0], [1], [0, 0, 1, 1], [], []>} : vector<8x512xbf16>, vector<512x512xbf16>, vector<8x512xf32> -> vector<8x512xf32>
    %c0_16 = arith.constant 0 : index
    %c0_17 = arith.constant 0 : index
    %34 = vector.load %arg6[%c0_16, %c0_17] : memref<1x512xf32, #tpu.memory_space<vmem>>, vector<1x512xf32>
    %35 = vector.broadcast %34 : vector<1x512xf32> to vector<8x512xf32>
    %36 = arith.addf %33, %35 : vector<8x512xf32>
    %37 = arith.negf %36 : vector<8x512xf32>
    %38 = math.exp %37 : vector<8x512xf32>
    %cst_18 = arith.constant 1.000000e+00 : f32
    %39 = vector.broadcast %cst_18 : f32 to vector<8x512xf32>
    %40 = arith.addf %39, %38 : vector<8x512xf32>
    %41 = arith.divf %39, %40 : vector<8x512xf32>
    %42 = arith.mulf %36, %41 : vector<8x512xf32>
    %c0_19 = arith.constant 0 : index
    %c0_20 = arith.constant 0 : index
    %43 = vector.load %arg7[%c0_19, %c0_20] : memref<8x512xf32, #tpu.memory_space<vmem>>, vector<8x512xf32>
    tpu.vector_store %arg7[%c0_19, %c0_20], %42 {strides = array<i32>} : memref<8x512xf32, #tpu.memory_space<vmem>>, vector<8x512xf32>,
    return
  }
}

</mosaic_0001>

<llo_original>
// kernel: _diffusion_embedding_forward.1
$region0: #{_diffusion_embedding_forward.1}
  #allocation0 [shape = 'u32[]', space=smem, size = 0x4, offset = 0x4, fixed_abs, tag = 'smem constant byte address 0x4 - core index']
  #allocation1 [shape = 'u32[144,128]{1,0:T(1,128)}', space=vmem, size = 0x12000, scoped, tag = 'internal scratch']
  %s0 = inlined_call_operand.vmem [shape: s32[8,1], index: 0, kind: input, shape index: {}]
  %s1 = inlined_call_operand.vmem [shape: s32[8,1], index: 1, kind: input, shape index: {}]
  %s2 = inlined_call_operand.vmem [shape: f32[8,1], index: 2, kind: input, shape index: {}]
  %s3 = inlined_call_operand.hbm [shape: bf16[128,512], index: 3, kind: input, shape index: {}]
  %s4 = inlined_call_operand.vmem [shape: f32[1,512], index: 4, kind: input, shape index: {}]
  %s5 = inlined_call_operand.hbm [shape: bf16[512,512], index: 5, kind: input, shape index: {}]
  %s6 = inlined_call_operand.vmem [shape: f32[1,512], index: 6, kind: input, shape index: {}]
  %s7 = inlined_call_operand.hbm [shape: f32[8,512], index: 7, kind: output, shape index: {}]
  %s8 = sld [smem:[#allocation0]]
  $region46: #{_diffusion_embedding_forward.1} parent=0
    _
  %s10 = ssub.s32 1, %s8
  %s11 = scalar_select 0, %s10, %s8
  $region1: #{_diffusion_embedding_forward.1} parent=0
    #allocation2 [shape = 'u8[131072]{0}', space=vmem, size = 0x20000, scoped, tag = 'input window, operand 3, single buffered']
    #allocation3 [shape = 's32[1]{0}', space=sflag, size = 0x4, scoped, tag = 'scoped memory for _diffusion_embedding_forward.1']
    #allocation4 [shape = 's32[1]{0}', space=sflag, size = 0x4, scoped, tag = 'scoped memory for _diffusion_embedding_forward.1']
    #allocation5 [shape = 'u8[524288]{0}', space=vmem, size = 0x80000, scoped, tag = 'input window, operand 5, single buffered']
    #allocation6 [shape = 's32[1]{0}', space=sflag, size = 0x4, scoped, tag = 'scoped memory for _diffusion_embedding_forward.1']
    #allocation7 [shape = 'u8[16384]{0}', space=vmem, size = 0x4000, scoped, tag = 'output window, operand 0, single buffered']
    %12 = vsyncpa [#allocation3], 0
    %13 = vsyncpa [#allocation6], 0
    %14 = vsyncpa [#allocation4], 0
    // Predicated region
    $region2: #{_diffusion_embedding_forward.1} parent=1 // pred_check
      _
    $region3: #{_diffusion_embedding_forward.1} parent=1 // pred_check_branch
      %16 = sbr.rel (0) target = $region5
    $region4: #{_diffusion_embedding_forward.1} parent=1 // pred_region
      _
    $region5: #{_diffusion_embedding_forward.1} parent=1 // pred_fallthru
      _
    // Predicated region
    $region6: #{_diffusion_embedding_forward.1} parent=1 // pred_check
      _
    $region7: #{_diffusion_embedding_forward.1} parent=1 // pred_check_branch
      %18 = sbr.rel (0) target = $region9
    $region8: #{_diffusion_embedding_forward.1} parent=1 // pred_region
      _
    $region9: #{_diffusion_embedding_forward.1} parent=1 // pred_fallthru
      _
    // Predicated region
    $region10: #{_diffusion_embedding_forward.1} parent=1 // pred_check
      _
    $region11: #{_diffusion_embedding_forward.1} parent=1 // pred_check_branch
      %20 = sbr.rel (0) target = $region13
    $region12: #{_diffusion_embedding_forward.1} parent=1 // pred_region
      _
    $region13: #{_diffusion_embedding_forward.1} parent=1 // pred_fallthru
      _
    // Predicated region
    $region14: #{_diffusion_embedding_forward.1} parent=1 // pred_check
      _
    $region15: #{_diffusion_embedding_forward.1} parent=1 // pred_check_branch
      %22 = sbr.rel (0) target = $region17
    $region16: #{_diffusion_embedding_forward.1} parent=1 // pred_region
      %s24 = ssub.s32 4096, 4096
      %25 = vsyncadd [#allocation3], %s24
      %s26 = sshll.u32 [#allocation2], 4
      %s27 = int_to_ptr.vmem [resolvable:$true] %s26
      %32 = dma.hbm_to_vmem [thread:$0]  %s3, 4096, %s27, [#allocation3], 256, 256, 16
    $region17: #{_diffusion_embedding_forward.1} parent=1 // pred_fallthru
      _
    // Predicated region
    $region18: #{_diffusion_embedding_forward.1} parent=1 // pred_check
      _
    $region19: #{_diffusion_embedding_forward.1} parent=1 // pred_check_branch
      %34 = sbr.rel (0) target = $region21
    $region20: #{_diffusion_embedding_forward.1} parent=1 // pred_region
      _
    $region21: #{_diffusion_embedding_forward.1} parent=1 // pred_fallthru
      _
    // Predicated region
    $region22: #{_diffusion_embedding_forward.1} parent=1 // pred_check
      _
    $region23: #{_diffusion_embedding_forward.1} parent=1 // pred_check_branch
      %36 = sbr.rel (0) target = $region25
    $region24: #{_diffusion_embedding_forward.1} parent=1 // pred_region
      %s38 = ssub.s32 16384, 16384
      %39 = vsyncadd [#allocation6], %s38
      %s40 = sshll.u32 [#allocation5], 4
      %s41 = int_to_ptr.vmem [resolvable:$true] %s40
      %46 = dma.hbm_to_vmem [thread:$0]  %s5, 16384, %s41, [#allocation6], 256, 256, 16
    $region25: #{_diffusion_embedding_forward.1} parent=1 // pred_fallthru
      _
    // Predicated region
    $region26: #{_diffusion_embedding_forward.1} parent=1 // pred_check
      _
    $region27: #{_diffusion_embedding_forward.1} parent=1 // pred_check_branch
      %48 = sbr.rel (0) target = $region29
    $region28: #{_diffusion_embedding_forward.1} parent=1 // pred_region
      _
    $region29: #{_diffusion_embedding_forward.1} parent=1 // pred_fallthru
      _
    // Predicated region
    $region30: #{_diffusion_embedding_forward.1} parent=1 // pred_check
      _
    $region31: #{_diffusion_embedding_forward.1} parent=1 // pred_check_branch
      %50 = sbr.rel (0) target = $region33
    $region32: #{_diffusion_embedding_forward.1} parent=1 // pred_region
      %51 = dma.done [#allocation3], 4096
    $region33: #{_diffusion_embedding_forward.1} parent=1 // pred_fallthru
      _
    // Predicated region
    $region34: #{_diffusion_embedding_forward.1} parent=1 // pred_check
      _
    $region35: #{_diffusion_embedding_forward.1} parent=1 // pred_check_branch
      %53 = sbr.rel (0) target = $region37
    $region36: #{_diffusion_embedding_forward.1} parent=1 // pred_region
      %54 = dma.done [#allocation6], 16384
    $region37: #{_diffusion_embedding_forward.1} parent=1 // pred_fallthru
      _
    %v56 = vlaneseq
    %v57 = vand.u32 %v56, 127
    %v58 = vld [vmem:[%s0] sm:$0xff]
    %v59 = vld [vmem:[%s1] sm:$0xff]
    %v60 = vld [vmem:[%s2] sm:$0xff]
    %61 = vset.pattern.permute.xlu0 0
    %62 = vperm.xlu0 %61, %v58
    %v63 = vpop.permute.xlu0 %62
    %vm64 = vcmp.eq.s32.totalorder %v57, %v63
    %v65 = vsub.f32 1.0, %v60
    %67 = vset.pattern.permute.xlu0 0
    %68 = vperm.xlu0 %67, %v65
    %v69 = vpop.permute.xlu0 %68
    %v71 = vsel %vm64, %v69, 0.0
    %72 = vset.pattern.permute.xlu0 0
    %73 = vperm.xlu0 %72, %v59
    %v74 = vpop.permute.xlu0 %73
    %vm75 = vcmp.eq.s32.totalorder %v57, %v74
    %77 = vset.pattern.permute.xlu0 0
    %78 = vperm.xlu0 %77, %v60
    %v79 = vpop.permute.xlu0 %78
    %v81 = vsel %vm75, %v79, 0.0
    %v82 = vadd.f32 %v71, %v81
    %v83 = vpack.c.bf16 %v82, %v82
    %v84 = vld [vmem:[#allocation2] sm:$0xff]
    %v85 = vld [vmem:[#allocation2 + $0x8] sm:$0xff]
    %v86 = vld [vmem:[#allocation2 + $0x10] sm:$0xff]
    %v87 = vld [vmem:[#allocation2 + $0x18] sm:$0xff]
    %v88 = vld [vmem:[#allocation2 + $0x20] sm:$0xff]
    %v89 = vld [vmem:[#allocation2 + $0x28] sm:$0xff]
    %v90 = vld [vmem:[#allocation2 + $0x30] sm:$0xff]
    %v91 = vld [vmem:[#allocation2 + $0x38] sm:$0xff]
    %v92 = vld [vmem:[#allocation2 + $0x40] sm:$0xff]
    %v93 = vld [vmem:[#allocation2 + $0x48] sm:$0xff]
    %v94 = vld [vmem:[#allocation2 + $0x50] sm:$0xff]
    %v95 = vld [vmem:[#allocation2 + $0x58] sm:$0xff]
    %v96 = vld [vmem:[#allocation2 + $0x60] sm:$0xff]
    %v97 = vld [vmem:[#allocation2 + $0x68] sm:$0xff]
    %v98 = vld [vmem:[#allocation2 + $0x70] sm:$0xff]
    %v99 = vld [vmem:[#allocation2 + $0x78] sm:$0xff]
    %v100 = vld [vmem:[#allocation2 + $0x80] sm:$0xff]
    %v101 = vld [vmem:[#allocation2 + $0x88] sm:$0xff]
    %v102 = vld [vmem:[#allocation2 + $0x90] sm:$0xff]
    %v103 = vld [vmem:[#allocation2 + $0x98] sm:$0xff]
    %v104 = vld [vmem:[#allocation2 + $0xa0] sm:$0xff]
    %v105 = vld [vmem:[#allocation2 + $0xa8] sm:$0xff]
    %v106 = vld [vmem:[#allocation2 + $0xb0] sm:$0xff]
    %v107 = vld [vmem:[#allocation2 + $0xb8] sm:$0xff]
    %v108 = vld [vmem:[#allocation2 + $0xc0] sm:$0xff]
    %v109 = vld [vmem:[#allocation2 + $0xc8] sm:$0xff]
    %v110 = vld [vmem:[#allocation2 + $0xd0] sm:$0xff]
    %v111 = vld [vmem:[#allocation2 + $0xd8] sm:$0xff]
    %v112 = vld [vmem:[#allocation2 + $0xe0] sm:$0xff]
    %v113 = vld [vmem:[#allocation2 + $0xe8] sm:$0xff]
    %v114 = vld [vmem:[#allocation2 + $0xf0] sm:$0xff]
    %v115 = vld [vmem:[#allocation2 + $0xf8] sm:$0xff]
    %v116 = vld [vmem:[%s4] sm:$0xf]
    %v118 = vlaneseq
    %v119 = vshrl.u32 %v118, 7
    %v120 = vsub.s32 0, %v119
    %v121 = vrot.slane %v116, %v120
    %v122 = vlaneseq
    %v123 = vshrl.u32 %v122, 7
    %v124 = vsub.s32 1, %v123
    %v125 = vrot.slane %v116, %v124
    %v126 = vlaneseq
    %v127 = vshrl.u32 %v126, 7
    %v128 = vsub.s32 2, %v127
    %v129 = vrot.slane %v116, %v128
    %v130 = vlaneseq
    %v131 = vshrl.u32 %v130, 7
    %v132 = vsub.s32 3, %v131
    %v133 = vrot.slane %v116, %v132
    %v170 = vunpack.c.l.b16 %v84
    %v171 = vunpack.c.h.b16 %v84
    %v172 = vunpack.c.l.b16 %v85
    %v173 = vunpack.c.h.b16 %v85
    %v174 = vunpack.c.l.b16 %v86
    %v175 = vunpack.c.h.b16 %v86
    %v176 = vunpack.c.l.b16 %v87
    %v177 = vunpack.c.h.b16 %v87
    %v178 = vunpack.c.l.b16 %v88
    %v179 = vunpack.c.h.b16 %v88
    %v180 = vunpack.c.l.b16 %v89
    %v181 = vunpack.c.h.b16 %v89
    %v182 = vunpack.c.l.b16 %v90
    %v183 = vunpack.c.h.b16 %v90
    %v184 = vunpack.c.l.b16 %v91
    %v185 = vunpack.c.h.b16 %v91
    %v186 = vunpack.c.l.b16 %v92
    %v187 = vunpack.c.h.b16 %v92
    %v188 = vunpack.c.l.b16 %v93
    %v189 = vunpack.c.h.b16 %v93
    %v190 = vunpack.c.l.b16 %v94
    %v191 = vunpack.c.h.b16 %v94
    %v192 = vunpack.c.l.b16 %v95
    %v193 = vunpack.c.h.b16 %v95
    %v194 = vunpack.c.l.b16 %v96
    %v195 = vunpack.c.h.b16 %v96
    %v196 = vunpack.c.l.b16 %v97
    %v197 = vunpack.c.h.b16 %v97
    %v198 = vunpack.c.l.b16 %v98
    %v199 = vunpack.c.h.b16 %v98
    %v200 = vunpack.c.l.b16 %v99
    %v201 = vunpack.c.h.b16 %v99
    %v202 = vunpack.c.l.b16 %v100
    %v203 = vunpack.c.h.b16 %v100
    %v204 = vunpack.c.l.b16 %v101
    %v205 = vunpack.c.h.b16 %v101
    %v206 = vunpack.c.l.b16 %v102
    %v207 = vunpack.c.h.b16 %v102
    %v208 = vunpack.c.l.b16 %v103
    %v209 = vunpack.c.h.b16 %v103
    %v210 = vunpack.c.l.b16 %v104
    %v211 = vunpack.c.h.b16 %v104
    %v212 = vunpack.c.l.b16 %v105
    %v213 = vunpack.c.h.b16 %v105
    %v214 = vunpack.c.l.b16 %v106
    %v215 = vunpack.c.h.b16 %v106
    %v216 = vunpack.c.l.b16 %v107
    %v217 = vunpack.c.h.b16 %v107
    %v218 = vunpack.c.l.b16 %v108
    %v219 = vunpack.c.h.b16 %v108
    %v220 = vunpack.c.l.b16 %v109
    %v221 = vunpack.c.h.b16 %v109
    %v222 = vunpack.c.l.b16 %v110
    %v223 = vunpack.c.h.b16 %v110
    %v224 = vunpack.c.l.b16 %v111
    %v225 = vunpack.c.h.b16 %v111
    %v226 = vunpack.c.l.b16 %v112
    %v227 = vunpack.c.h.b16 %v112
    %v228 = vunpack.c.l.b16 %v113
    %v229 = vunpack.c.h.b16 %v113
    %v230 = vunpack.c.l.b16 %v114
    %v231 = vunpack.c.h.b16 %v114
    %v232 = vunpack.c.l.b16 %v115
    %v233 = vunpack.c.h.b16 %v115
    %v234 = vpack.c.b16 %v174, %v170
    %v235 = vpack.c.b16 %v175, %v171
    %v236 = vpack.c.b16 %v176, %v172
    %v237 = vpack.c.b16 %v177, %v173
    %v238 = vpack.c.b16 %v182, %v178
    %v239 = vpack.c.b16 %v183, %v179
    %v240 = vpack.c.b16 %v184, %v180
    %v241 = vpack.c.b16 %v185, %v181
    %v242 = vpack.c.b16 %v190, %v186
    %v243 = vpack.c.b16 %v191, %v187
    %v244 = vpack.c.b16 %v192, %v188
    %v245 = vpack.c.b16 %v193, %v189
    %v246 = vpack.c.b16 %v198, %v194
    %v247 = vpack.c.b16 %v199, %v195
    %v248 = vpack.c.b16 %v200, %v196
    %v249 = vpack.c.b16 %v201, %v197
    %v250 = vpack.c.b16 %v206, %v202
    %v251 = vpack.c.b16 %v207, %v203
    %v252 = vpack.c.b16 %v208, %v204
    %v253 = vpack.c.b16 %v209, %v205
    %v254 = vpack.c.b16 %v214, %v210
    %v255 = vpack.c.b16 %v215, %v211
    %v256 = vpack.c.b16 %v216, %v212
    %v257 = vpack.c.b16 %v217, %v213
    %v258 = vpack.c.b16 %v222, %v218
    %v259 = vpack.c.b16 %v223, %v219
    %v260 = vpack.c.b16 %v224, %v220
    %v261 = vpack.c.b16 %v225, %v221
    %v262 = vpack.c.b16 %v230, %v226
    %v263 = vpack.c.b16 %v231, %v227
    %v264 = vpack.c.b16 %v232, %v228
    %v265 = vpack.c.b16 %v233, %v229
    %298 = vmatprep.subr.bf16.mxu0 %v263
    %299 = vmatpush1.bf16.msra.mxu0 %v262
    %300 = vmatprep.subr.bf16.mxu0 %v259
    %301 = vmatpush1.bf16.msra.mxu0 %v258
    %302 = vmatprep.subr.bf16.mxu0 %v255
    %303 = vmatpush1.bf16.msra.mxu0 %v254
    %304 = vmatprep.subr.bf16.mxu0 %v251
    %305 = vmatpush1.bf16.msra.mxu0 %v250
    %306 = vmatprep.subr.bf16.mxu0 %v247
    %307 = vmatpush1.bf16.msra.mxu0 %v246
    %308 = vmatprep.subr.bf16.mxu0 %v243
    %309 = vmatpush1.bf16.msra.mxu0 %v242
    %310 = vmatprep.subr.bf16.mxu0 %v239
    %311 = vmatpush1.bf16.msra.mxu0 %v238
    %312 = vmatprep.subr.bf16.mxu0 %v235
    %313 = vmatpush1.bf16.msra.mxu0 %v234
    %314 = vmatprep.subr.bf16.mxu0 0
    %315 = vmatpush2.bf16.msra.mxu0 0
    %316 = vmatprep.subr.bf16.mxu0 0
    %317 = vmatpush2.bf16.msra.mxu0 0
    %318 = vmatprep.subr.bf16.mxu0 0
    %319 = vmatpush2.bf16.msra.mxu0 0
    %320 = vmatprep.subr.bf16.mxu0 0
    %321 = vmatpush2.bf16.msra.mxu0 0
    %322 = vmatprep.subr.bf16.mxu0 0
    %323 = vmatpush2.bf16.msra.mxu0 0
    %324 = vmatprep.subr.bf16.mxu0 0
    %325 = vmatpush2.bf16.msra.mxu0 0
    %326 = vmatprep.subr.bf16.mxu0 0
    %327 = vmatpush2.bf16.msra.mxu0 0
    %328 = vmatprep.subr.bf16.mxu0 0
    %329 = vmatpush2.bf16.msra.mxu0 0
    %330 = vmatprep.mubr.bf16.mxu0 0
    %331 = vmatmul.mubr.bf16.gmra.mxu0 %v83
    %v332 = vpop.f32.mrf.mxu0
    %v333 = vadd.f32 %v121, %v332
    %v334 = vpop.f32.mrf.mxu0
    %v335 = vadd.f32 %v125, %v334
    %v336 = vpop.f32.mrf.mxu0
    %v337 = vpop.f32.mrf.mxu0
    %338 = vdwg.mxu0
    %339 = vmatprep.subr.bf16.mxu0 %v265
    %340 = vmatpush1.bf16.msra.mxu0 %v264
    %341 = vmatprep.subr.bf16.mxu0 %v261
    %342 = vmatpush1.bf16.msra.mxu0 %v260
    %343 = vmatprep.subr.bf16.mxu0 %v257
    %344 = vmatpush1.bf16.msra.mxu0 %v256
    %345 = vmatprep.subr.bf16.mxu0 %v253
    %346 = vmatpush1.bf16.msra.mxu0 %v252
    %347 = vmatprep.subr.bf16.mxu0 %v249
    %348 = vmatpush1.bf16.msra.mxu0 %v248
    %349 = vmatprep.subr.bf16.mxu0 %v245
    %350 = vmatpush1.bf16.msra.mxu0 %v244
    %351 = vmatprep.subr.bf16.mxu0 %v241
    %352 = vmatpush1.bf16.msra.mxu0 %v240
    %353 = vmatprep.subr.bf16.mxu0 %v237
    %354 = vmatpush1.bf16.msra.mxu0 %v236
    %355 = vmatprep.subr.bf16.mxu0 0
    %356 = vmatpush2.bf16.msra.mxu0 0
    %357 = vmatprep.subr.bf16.mxu0 0
    %358 = vmatpush2.bf16.msra.mxu0 0
    %359 = vmatprep.subr.bf16.mxu0 0
    %360 = vmatpush2.bf16.msra.mxu0 0
    %361 = vmatprep.subr.bf16.mxu0 0
    %362 = vmatpush2.bf16.msra.mxu0 0
    %363 = vmatprep.subr.bf16.mxu0 0
    %364 = vmatpush2.bf16.msra.mxu0 0
    %365 = vmatprep.subr.bf16.mxu0 0
    %366 = vmatpush2.bf16.msra.mxu0 0
    %367 = vmatprep.subr.bf16.mxu0 0
    %368 = vmatpush2.bf16.msra.mxu0 0
    %369 = vmatprep.subr.bf16.mxu0 0
    %370 = vmatpush2.bf16.msra.mxu0 0
    %371 = vmatprep.mubr.bf16.mxu0 0
    %372 = vmatmul.mubr.bf16.gmra.mxu0 %v83
    %v373 = vpop.f32.mrf.mxu0
    %v374 = vadd.f32 %v129, %v373
    %v375 = vpop.f32.mrf.mxu0
    %v376 = vadd.f32 %v133, %v375
    %v377 = vpop.f32.mrf.mxu0
    %v378 = vpop.f32.mrf.mxu0
    %379 = vdwg.mxu0
    %v380 = vxor.u32 %v333, 2147483648
    %v381 = vxor.u32 %v335, 2147483648
    %v382 = vxor.u32 %v374, 2147483648
    %v383 = vxor.u32 %v376, 2147483648
    %v384 = vmul.f32 %v380, 1.442695
    %v385 = vpow.pop %v384
    %v386 = vmul.f32 %v381, 1.442695
    %v387 = vpow.pop %v386
    %v388 = vmul.f32 %v382, 1.442695
    %v389 = vpow.pop %v388
    %v390 = vmul.f32 %v383, 1.442695
    %v391 = vpow.pop %v390
    %v392 = vadd.f32 %v385, 1.0
    %v393 = vadd.f32 %v387, 1.0
    %v394 = vadd.f32 %v389, 1.0
    %v395 = vadd.f32 %v391, 1.0
    %v396 = vrcp.pop %v392
    %v397 = vmul.f32 1.0, %v396
    %v398 = vrcp.pop %v393
    %v399 = vmul.f32 1.0, %v398
    %v400 = vrcp.pop %v394
    %v401 = vmul.f32 1.0, %v400
    %v402 = vrcp.pop %v395
    %v403 = vmul.f32 1.0, %v402
    %v404 = vmul.f32 %v333, %v397
    %v405 = vmul.f32 %v335, %v399
    %v406 = vmul.f32 %v374, %v401
    %v407 = vmul.f32 %v376, %v403
    %v408 = vpack.c.bf16 %v404, %v404
    %v409 = vpack.c.bf16 %v405, %v405
    %v410 = vpack.c.bf16 %v406, %v406
    %v411 = vpack.c.bf16 %v407, %v407
    %v412 = vld [vmem:[#allocation5] sm:$0xff]
    %v413 = vld [vmem:[#allocation5 + $0x8] sm:$0xff]
    %v414 = vld [vmem:[#allocation5 + $0x10] sm:$0xff]
    %v415 = vld [vmem:[#allocation5 + $0x18] sm:$0xff]
    %v416 = vld [vmem:[#allocation5 + $0x20] sm:$0xff]
    %v417 = vld [vmem:[#allocation5 + $0x28] sm:$0xff]
    %v418 = vld [vmem:[#allocation5 + $0x30] sm:$0xff]
    %v419 = vld [vmem:[#allocation5 + $0x38] sm:$0xff]
    %v420 = vld [vmem:[#allocation5 + $0x40] sm:$0xff]
    %v421 = vld [vmem:[#allocation5 + $0x48] sm:$0xff]
    %v422 = vld [vmem:[#allocation5 + $0x50] sm:$0xff]
    %v423 = vld [vmem:[#allocation5 + $0x58] sm:$0xff]
    %v424 = vld [vmem:[#allocation5 + $0x60] sm:$0xff]
    %v425 = vld [vmem:[#allocation5 + $0x68] sm:$0xff]
    %v426 = vld [vmem:[#allocation5 + $0x70] sm:$0xff]
    %v427 = vld [vmem:[#allocation5 + $0x78] sm:$0xff]
    %v428 = vld [vmem:[#allocation5 + $0x80] sm:$0xff]
    %v429 = vld [vmem:[#allocation5 + $0x88] sm:$0xff]
    %v430 = vld [vmem:[#allocation5 + $0x90] sm:$0xff]
    %v431 = vld [vmem:[#allocation5 + $0x98] sm:$0xff]
    %v432 = vld [vmem:[#allocation5 + $0xa0] sm:$0xff]
    %v433 = vld [vmem:[#allocation5 + $0xa8] sm:$0xff]
    %v434 = vld [vmem:[#allocation5 + $0xb0] sm:$0xff]
    %v435 = vld [vmem:[#allocation5 + $0xb8] sm:$0xff]
    %v436 = vld [vmem:[#allocation5 + $0xc0] sm:$0xff]
    %v437 = vld [vmem:[#allocation5 + $0xc8] sm:$0xff]
    %v438 = vld [vmem:[#allocation5 + $0xd0] sm:$0xff]
    %v439 = vld [vmem:[#allocation5 + $0xd8] sm:$0xff]
    %v440 = vld [vmem:[#allocation5 + $0xe0] sm:$0xff]
    %v441 = vld [vmem:[#allocation5 + $0xe8] sm:$0xff]
    %v442 = vld [vmem:[#allocation5 + $0xf0] sm:$0xff]
    %v443 = vld [vmem:[#allocation5 + $0xf8] sm:$0xff]
    %v444 = vld [vmem:[#allocation5 + $0x100] sm:$0xff]
    %v445 = vld [vmem:[#allocation5 + $0x108] sm:$0xff]
    %v446 = vld [vmem:[#allocation5 + $0x110] sm:$0xff]
    %v447 = vld [vmem:[#allocation5 + $0x118] sm:$0xff]
    %v448 = vld [vmem:[#allocation5 + $0x120] sm:$0xff]
    %v449 = vld [vmem:[#allocation5 + $0x128] sm:$0xff]
    %v450 = vld [vmem:[#allocation5 + $0x130] sm:$0xff]
    %v451 = vld [vmem:[#allocation5 + $0x138] sm:$0xff]
    %v452 = vld [vmem:[#allocation5 + $0x140] sm:$0xff]
    %v453 = vld [vmem:[#allocation5 + $0x148] sm:$0xff]
    %v454 = vld [vmem:[#allocation5 + $0x150] sm:$0xff]
    %v455 = vld [vmem:[#allocation5 + $0x158] sm:$0xff]
    %v456 = vld [vmem:[#allocation5 + $0x160] sm:$0xff]
    %v457 = vld [vmem:[#allocation5 + $0x168] sm:$0xff]
    %v458 = vld [vmem:[#allocation5 + $0x170] sm:$0xff]
    %v459 = vld [vmem:[#allocation5 + $0x178] sm:$0xff]
    %v460 = vld [vmem:[#allocation5 + $0x180] sm:$0xff]
    %v461 = vld [vmem:[#allocation5 + $0x188] sm:$0xff]
    %v462 = vld [vmem:[#allocation5 + $0x190] sm:$0xff]
    %v463 = vld [vmem:[#allocation5 + $0x198] sm:$0xff]
    %v464 = vld [vmem:[#allocation5 + $0x1a0] sm:$0xff]
    %v465 = vld [vmem:[#allocation5 + $0x1a8] sm:$0xff]
    %v466 = vld [vmem:[#allocation5 + $0x1b0] sm:$0xff]
    %v467 = vld [vmem:[#allocation5 + $0x1b8] sm:$0xff]
    %v468 = vld [vmem:[#allocation5 + $0x1c0] sm:$0xff]
    %v469 = vld [vmem:[#allocation5 + $0x1c8] sm:$0xff]
    %v470 = vld [vmem:[#allocation5 + $0x1d0] sm:$0xff]
    %v471 = vld [vmem:[#allocation5 + $0x1d8] sm:$0xff]
    %v472 = vld [vmem:[#allocation5 + $0x1e0] sm:$0xff]
    %v473 = vld [vmem:[#allocation5 + $0x1e8] sm:$0xff]
    %v474 = vld [vmem:[#allocation5 + $0x1f0] sm:$0xff]
    %v475 = vld [vmem:[#allocation5 + $0x1f8] sm:$0xff]
    %v476 = vld [vmem:[#allocation5 + $0x200] sm:$0xff]
    %v477 = vld [vmem:[#allocation5 + $0x208] sm:$0xff]
    %v478 = vld [vmem:[#allocation5 + $0x210] sm:$0xff]
    %v479 = vld [vmem:[#allocation5 + $0x218] sm:$0xff]
    %v480 = vld [vmem:[#allocation5 + $0x220] sm:$0xff]
    %v481 = vld [vmem:[#allocation5 + $0x228] sm:$0xff]
    %v482 = vld [vmem:[#allocation5 + $0x230] sm:$0xff]
    %v483 = vld [vmem:[#allocation5 + $0x238] sm:$0xff]
    %v484 = vld [vmem:[#allocation5 + $0x240] sm:$0xff]
    %v485 = vld [vmem:[#allocation5 + $0x248] sm:$0xff]
    %v486 = vld [vmem:[#allocation5 + $0x250] sm:$0xff]
    %v487 = vld [vmem:[#allocation5 + $0x258] sm:$0xff]
    %v488 = vld [vmem:[#allocation5 + $0x260] sm:$0xff]
    %v489 = vld [vmem:[#allocation5 + $0x268] sm:$0xff]
    %v490 = vld [vmem:[#allocation5 + $0x270] sm:$0xff]
    %v491 = vld [vmem:[#allocation5 + $0x278] sm:$0xff]
    %v492 = vld [vmem:[#allocation5 + $0x280] sm:$0xff]
    %v493 = vld [vmem:[#allocation5 + $0x288] sm:$0xff]
    %v494 = vld [vmem:[#allocation5 + $0x290] sm:$0xff]
    %v495 = vld [vmem:[#allocation5 + $0x298] sm:$0xff]
    %v496 = vld [vmem:[#allocation5 + $0x2a0] sm:$0xff]
    %v497 = vld [vmem:[#allocation5 + $0x2a8] sm:$0xff]
    %v498 = vld [vmem:[#allocation5 + $0x2b0] sm:$0xff]
    %v499 = vld [vmem:[#allocation5 + $0x2b8] sm:$0xff]
    %v500 = vld [vmem:[#allocation5 + $0x2c0] sm:$0xff]
    %v501 = vld [vmem:[#allocation5 + $0x2c8] sm:$0xff]
    %v502 = vld [vmem:[#allocation5 + $0x2d0] sm:$0xff]
    %v503 = vld [vmem:[#allocation5 + $0x2d8] sm:$0xff]
    %v504 = vld [vmem:[#allocation5 + $0x2e0] sm:$0xff]
    %v505 = vld [vmem:[#allocation5 + $0x2e8] sm:$0xff]
    %v506 = vld [vmem:[#allocation5 + $0x2f0] sm:$0xff]
    %v507 = vld [vmem:[#allocation5 + $0x2f8] sm:$0xff]
    %v508 = vld [vmem:[#allocation5 + $0x300] sm:$0xff]
    %v509 = vld [vmem:[#allocation5 + $0x308] sm:$0xff]
    %v510 = vld [vmem:[#allocation5 + $0x310] sm:$0xff]
    %v511 = vld [vmem:[#allocation5 + $0x318] sm:$0xff]
    %v512 = vld [vmem:[#allocation5 + $0x320] sm:$0xff]
    %v513 = vld [vmem:[#allocation5 + $0x328] sm:$0xff]
    %v514 = vld [vmem:[#allocation5 + $0x330] sm:$0xff]
    %v515 = vld [vmem:[#allocation5 + $0x338] sm:$0xff]
    %v516 = vld [vmem:[#allocation5 + $0x340] sm:$0xff]
    %v517 = vld [vmem:[#allocation5 + $0x348] sm:$0xff]
    %v518 = vld [vmem:[#allocation5 + $0x350] sm:$0xff]
    %v519 = vld [vmem:[#allocation5 + $0x358] sm:$0xff]
    %v520 = vld [vmem:[#allocation5 + $0x360] sm:$0xff]
    %v521 = vld [vmem:[#allocation5 + $0x368] sm:$0xff]
    %v522 = vld [vmem:[#allocation5 + $0x370] sm:$0xff]
    %v523 = vld [vmem:[#allocation5 + $0x378] sm:$0xff]
    %v524 = vld [vmem:[#allocation5 + $0x380] sm:$0xff]
    %v525 = vld [vmem:[#allocation5 + $0x388] sm:$0xff]
    %v526 = vld [vmem:[#allocation5 + $0x390] sm:$0xff]
    %v527 = vld [vmem:[#allocation5 + $0x398] sm:$0xff]
    %v528 = vld [vmem:[#allocation5 + $0x3a0] sm:$0xff]
    %v529 = vld [vmem:[#allocation5 + $0x3a8] sm:$0xff]
    %v530 = vld [vmem:[#allocation5 + $0x3b0] sm:$0xff]
    %v531 = vld [vmem:[#allocation5 + $0x3b8] sm:$0xff]
    %v532 = vld [vmem:[#allocation5 + $0x3c0] sm:$0xff]
    %v533 = vld [vmem:[#allocation5 + $0x3c8] sm:$0xff]
    %v534 = vld [vmem:[#allocation5 + $0x3d0] sm:$0xff]
    %v535 = vld [vmem:[#allocation5 + $0x3d8] sm:$0xff]
    %v536 = vld [vmem:[#allocation5 + $0x3e0] sm:$0xff]
    %v537 = vld [vmem:[#allocation5 + $0x3e8] sm:$0xff]
    %v538 = vld [vmem:[#allocation5 + $0x3f0] sm:$0xff]
    %v539 = vld [vmem:[#allocation5 + $0x3f8] sm:$0xff]
    %v540 = vld [vmem:[%s6] sm:$0xf]
    %v542 = vlaneseq
    %v543 = vshrl.u32 %v542, 7
    %v544 = vsub.s32 0, %v543
    %v545 = vrot.slane %v540, %v544
    %v546 = vlaneseq
    %v547 = vshrl.u32 %v546, 7
    %v548 = vsub.s32 1, %v547
    %v549 = vrot.slane %v540, %v548
    %v550 = vlaneseq
    %v551 = vshrl.u32 %v550, 7
    %v552 = vsub.s32 2, %v551
    %v553 = vrot.slane %v540, %v552
    %v554 = vlaneseq
    %v555 = vshrl.u32 %v554, 7
    %v556 = vsub.s32 3, %v555
    %v557 = vrot.slane %v540, %v556
    %v690 = vunpack.c.l.b16 %v412
    %v691 = vunpack.c.h.b16 %v412
    %v692 = vunpack.c.l.b16 %v413
    %v693 = vunpack.c.h.b16 %v413
    %v694 = vunpack.c.l.b16 %v414
    %v695 = vunpack.c.h.b16 %v414
    %v696 = vunpack.c.l.b16 %v415
    %v697 = vunpack.c.h.b16 %v415
    %v698 = vunpack.c.l.b16 %v416
    %v699 = vunpack.c.h.b16 %v416
    %v700 = vunpack.c.l.b16 %v417
    %v701 = vunpack.c.h.b16 %v417
    %v702 = vunpack.c.l.b16 %v418
    %v703 = vunpack.c.h.b16 %v418
    %v704 = vunpack.c.l.b16 %v419
    %v705 = vunpack.c.h.b16 %v419
    %v706 = vunpack.c.l.b16 %v420
    %v707 = vunpack.c.h.b16 %v420
    %v708 = vunpack.c.l.b16 %v421
    %v709 = vunpack.c.h.b16 %v421
    %v710 = vunpack.c.l.b16 %v422
    %v711 = vunpack.c.h.b16 %v422
    %v712 = vunpack.c.l.b16 %v423
    %v713 = vunpack.c.h.b16 %v423
    %v714 = vunpack.c.l.b16 %v424
    %v715 = vunpack.c.h.b16 %v424
    %v716 = vunpack.c.l.b16 %v425
    %v717 = vunpack.c.h.b16 %v425
    %v718 = vunpack.c.l.b16 %v426
    %v719 = vunpack.c.h.b16 %v426
    %v720 = vunpack.c.l.b16 %v427
    %v721 = vunpack.c.h.b16 %v427
    %v722 = vunpack.c.l.b16 %v428
    %v723 = vunpack.c.h.b16 %v428
    %v724 = vunpack.c.l.b16 %v429
    %v725 = vunpack.c.h.b16 %v429
    %v726 = vunpack.c.l.b16 %v430
    %v727 = vunpack.c.h.b16 %v430
    %v728 = vunpack.c.l.b16 %v431
    %v729 = vunpack.c.h.b16 %v431
    %v730 = vunpack.c.l.b16 %v432
    %v731 = vunpack.c.h.b16 %v432
    %v732 = vunpack.c.l.b16 %v433
    %v733 = vunpack.c.h.b16 %v433
    %v734 = vunpack.c.l.b16 %v434
    %v735 = vunpack.c.h.b16 %v434
    %v736 = vunpack.c.l.b16 %v435
    %v737 = vunpack.c.h.b16 %v435
    %v738 = vunpack.c.l.b16 %v436
    %v739 = vunpack.c.h.b16 %v436
    %v740 = vunpack.c.l.b16 %v437
    %v741 = vunpack.c.h.b16 %v437
    %v742 = vunpack.c.l.b16 %v438
    %v743 = vunpack.c.h.b16 %v438
    %v744 = vunpack.c.l.b16 %v439
    %v745 = vunpack.c.h.b16 %v439
    %v746 = vunpack.c.l.b16 %v440
    %v747 = vunpack.c.h.b16 %v440
    %v748 = vunpack.c.l.b16 %v441
    %v749 = vunpack.c.h.b16 %v441
    %v750 = vunpack.c.l.b16 %v442
    %v751 = vunpack.c.h.b16 %v442
    %v752 = vunpack.c.l.b16 %v443
    %v753 = vunpack.c.h.b16 %v443
    %v754 = vunpack.c.l.b16 %v444
    %v755 = vunpack.c.h.b16 %v444
    %v756 = vunpack.c.l.b16 %v445
    %v757 = vunpack.c.h.b16 %v445
    %v758 = vunpack.c.l.b16 %v446
    %v759 = vunpack.c.h.b16 %v446
    %v760 = vunpack.c.l.b16 %v447
    %v761 = vunpack.c.h.b16 %v447
    %v762 = vunpack.c.l.b16 %v448
    %v763 = vunpack.c.h.b16 %v448
    %v764 = vunpack.c.l.b16 %v449
    %v765 = vunpack.c.h.b16 %v449
    %v766 = vunpack.c.l.b16 %v450
    %v767 = vunpack.c.h.b16 %v450
    %v768 = vunpack.c.l.b16 %v451
    %v769 = vunpack.c.h.b16 %v451
    %v770 = vunpack.c.l.b16 %v452
    %v771 = vunpack.c.h.b16 %v452
    %v772 = vunpack.c.l.b16 %v453
    %v773 = vunpack.c.h.b16 %v453
    %v774 = vunpack.c.l.b16 %v454
    %v775 = vunpack.c.h.b16 %v454
    %v776 = vunpack.c.l.b16 %v455
    %v777 = vunpack.c.h.b16 %v455
    %v778 = vunpack.c.l.b16 %v456
    %v779 = vunpack.c.h.b16 %v456
    %v780 = vunpack.c.l.b16 %v457
    %v781 = vunpack.c.h.b16 %v457
    %v782 = vunpack.c.l.b16 %v458
    %v783 = vunpack.c.h.b16 %v458
    %v784 = vunpack.c.l.b16 %v459
    %v785 = vunpack.c.h.b16 %v459
    %v786 = vunpack.c.l.b16 %v460
    %v787 = vunpack.c.h.b16 %v460
    %v788 = vunpack.c.l.b16 %v461
    %v789 = vunpack.c.h.b16 %v461
    %v790 = vunpack.c.l.b16 %v462
    %v791 = vunpack.c.h.b16 %v462
    %v792 = vunpack.c.l.b16 %v463
    %v793 = vunpack.c.h.b16 %v463
    %v794 = vunpack.c.l.b16 %v464
    %v795 = vunpack.c.h.b16 %v464
    %v796 = vunpack.c.l.b16 %v465
    %v797 = vunpack.c.h.b16 %v465
    %v798 = vunpack.c.l.b16 %v466
    %v799 = vunpack.c.h.b16 %v466
    %v800 = vunpack.c.l.b16 %v467
    %v801 = vunpack.c.h.b16 %v467
    %v802 = vunpack.c.l.b16 %v468
    %v803 = vunpack.c.h.b16 %v468
    %v804 = vunpack.c.l.b16 %v469
    %v805 = vunpack.c.h.b16 %v469
    %v806 = vunpack.c.l.b16 %v470
    %v807 = vunpack.c.h.b16 %v470
    %v808 = vunpack.c.l.b16 %v471
    %v809 = vunpack.c.h.b16 %v471
    %v810 = vunpack.c.l.b16 %v472
    %v811 = vunpack.c.h.b16 %v472
    %v812 = vunpack.c.l.b16 %v473
    %v813 = vunpack.c.h.b16 %v473
    %v814 = vunpack.c.l.b16 %v474
    %v815 = vunpack.c.h.b16 %v474
    %v816 = vunpack.c.l.b16 %v475
    %v817 = vunpack.c.h.b16 %v475
    %v818 = vunpack.c.l.b16 %v476
    %v819 = vunpack.c.h.b16 %v476
    %v820 = vunpack.c.l.b16 %v477
    %v821 = vunpack.c.h.b16 %v477
    %v822 = vunpack.c.l.b16 %v478
    %v823 = vunpack.c.h.b16 %v478
    %v824 = vunpack.c.l.b16 %v479
    %v825 = vunpack.c.h.b16 %v479
    %v826 = vunpack.c.l.b16 %v480
    %v827 = vunpack.c.h.b16 %v480
    %v828 = vunpack.c.l.b16 %v481
    %v829 = vunpack.c.h.b16 %v481
    %v830 = vunpack.c.l.b16 %v482
    %v831 = vunpack.c.h.b16 %v482
    %v832 = vunpack.c.l.b16 %v483
    %v833 = vunpack.c.h.b16 %v483
    %v834 = vunpack.c.l.b16 %v484
    %v835 = vunpack.c.h.b16 %v484
    %v836 = vunpack.c.l.b16 %v485
    %v837 = vunpack.c.h.b16 %v485
    %v838 = vunpack.c.l.b16 %v486
    %v839 = vunpack.c.h.b16 %v486
    %v840 = vunpack.c.l.b16 %v487
    %v841 = vunpack.c.h.b16 %v487
    %v842 = vunpack.c.l.b16 %v488
    %v843 = vunpack.c.h.b16 %v488
    %v844 = vunpack.c.l.b16 %v489
    %v845 = vunpack.c.h.b16 %v489
    %v846 = vunpack.c.l.b16 %v490
    %v847 = vunpack.c.h.b16 %v490
    %v848 = vunpack.c.l.b16 %v491
    %v849 = vunpack.c.h.b16 %v491
    %v850 = vunpack.c.l.b16 %v492
    %v851 = vunpack.c.h.b16 %v492
    %v852 = vunpack.c.l.b16 %v493
    %v853 = vunpack.c.h.b16 %v493
    %v854 = vunpack.c.l.b16 %v494
    %v855 = vunpack.c.h.b16 %v494
    %v856 = vunpack.c.l.b16 %v495
    %v857 = vunpack.c.h.b16 %v495
    %v858 = vunpack.c.l.b16 %v496
    %v859 = vunpack.c.h.b16 %v496
    %v860 = vunpack.c.l.b16 %v497
    %v861 = vunpack.c.h.b16 %v497
    %v862 = vunpack.c.l.b16 %v498
    %v863 = vunpack.c.h.b16 %v498
    %v864 = vunpack.c.l.b16 %v499
    %v865 = vunpack.c.h.b16 %v499
    %v866 = vunpack.c.l.b16 %v500
    %v867 = vunpack.c.h.b16 %v500
    %v868 = vunpack.c.l.b16 %v501
    %v869 = vunpack.c.h.b16 %v501
    %v870 = vunpack.c.l.b16 %v502
    %v871 = vunpack.c.h.b16 %v502
    %v872 = vunpack.c.l.b16 %v503
    %v873 = vunpack.c.h.b16 %v503
    %v874 = vunpack.c.l.b16 %v504
    %v875 = vunpack.c.h.b16 %v504
    %v876 = vunpack.c.l.b16 %v505
    %v877 = vunpack.c.h.b16 %v505
    %v878 = vunpack.c.l.b16 %v506
    %v879 = vunpack.c.h.b16 %v506
    %v880 = vunpack.c.l.b16 %v507
    %v881 = vunpack.c.h.b16 %v507
    %v882 = vunpack.c.l.b16 %v508
    %v883 = vunpack.c.h.b16 %v508
    %v884 = vunpack.c.l.b16 %v509
    %v885 = vunpack.c.h.b16 %v509
    %v886 = vunpack.c.l.b16 %v510
    %v887 = vunpack.c.h.b16 %v510
    %v888 = vunpack.c.l.b16 %v511
    %v889 = vunpack.c.h.b16 %v511
    %v890 = vunpack.c.l.b16 %v512
    %v891 = vunpack.c.h.b16 %v512
    %v892 = vunpack.c.l.b16 %v513
    %v893 = vunpack.c.h.b16 %v513
    %v894 = vunpack.c.l.b16 %v514
    %v895 = vunpack.c.h.b16 %v514
    %v896 = vunpack.c.l.b16 %v515
    %v897 = vunpack.c.h.b16 %v515
    %v898 = vunpack.c.l.b16 %v516
    %v899 = vunpack.c.h.b16 %v516
    %v900 = vunpack.c.l.b16 %v517
    %v901 = vunpack.c.h.b16 %v517
    %v902 = vunpack.c.l.b16 %v518
    %v903 = vunpack.c.h.b16 %v518
    %v904 = vunpack.c.l.b16 %v519
    %v905 = vunpack.c.h.b16 %v519
    %v906 = vunpack.c.l.b16 %v520
    %v907 = vunpack.c.h.b16 %v520
    %v908 = vunpack.c.l.b16 %v521
    %v909 = vunpack.c.h.b16 %v521
    %v910 = vunpack.c.l.b16 %v522
    %v911 = vunpack.c.h.b16 %v522
    %v912 = vunpack.c.l.b16 %v523
    %v913 = vunpack.c.h.b16 %v523
    %v914 = vunpack.c.l.b16 %v524
    %v915 = vunpack.c.h.b16 %v524
    %v916 = vunpack.c.l.b16 %v525
    %v917 = vunpack.c.h.b16 %v525
    %v918 = vunpack.c.l.b16 %v526
    %v919 = vunpack.c.h.b16 %v526
    %v920 = vunpack.c.l.b16 %v527
    %v921 = vunpack.c.h.b16 %v527
    %v922 = vunpack.c.l.b16 %v528
    %v923 = vunpack.c.h.b16 %v528
    %v924 = vunpack.c.l.b16 %v529
    %v925 = vunpack.c.h.b16 %v529
    %v926 = vunpack.c.l.b16 %v530
    %v927 = vunpack.c.h.b16 %v530
    %v928 = vunpack.c.l.b16 %v531
    %v929 = vunpack.c.h.b16 %v531
    %v930 = vunpack.c.l.b16 %v532
    %v931 = vunpack.c.h.b16 %v532
    %v932 = vunpack.c.l.b16 %v533
    %v933 = vunpack.c.h.b16 %v533
    %v934 = vunpack.c.l.b16 %v534
    %v935 = vunpack.c.h.b16 %v534
    %v936 = vunpack.c.l.b16 %v535
    %v937 = vunpack.c.h.b16 %v535
    %v938 = vunpack.c.l.b16 %v536
    %v939 = vunpack.c.h.b16 %v536
    %v940 = vunpack.c.l.b16 %v537
    %v941 = vunpack.c.h.b16 %v537
    %v942 = vunpack.c.l.b16 %v538
    %v943 = vunpack.c.h.b16 %v538
    %v944 = vunpack.c.l.b16 %v539
    %v945 = vunpack.c.h.b16 %v539
    %v946 = vpack.c.b16 %v694, %v690
    %v947 = vpack.c.b16 %v695, %v691
    %v948 = vpack.c.b16 %v696, %v692
    %v949 = vpack.c.b16 %v697, %v693
    %v950 = vpack.c.b16 %v702, %v698
    %v951 = vpack.c.b16 %v703, %v699
    %v952 = vpack.c.b16 %v704, %v700
    %v953 = vpack.c.b16 %v705, %v701
    %v954 = vpack.c.b16 %v710, %v706
    %v955 = vpack.c.b16 %v711, %v707
    %v956 = vpack.c.b16 %v712, %v708
    %v957 = vpack.c.b16 %v713, %v709
    %v958 = vpack.c.b16 %v718, %v714
    %v959 = vpack.c.b16 %v719, %v715
    %v960 = vpack.c.b16 %v720, %v716
    %v961 = vpack.c.b16 %v721, %v717
    %v962 = vpack.c.b16 %v726, %v722
    %v963 = vpack.c.b16 %v727, %v723
    %v964 = vpack.c.b16 %v728, %v724
    %v965 = vpack.c.b16 %v729, %v725
    %v966 = vpack.c.b16 %v734, %v730
    %v967 = vpack.c.b16 %v735, %v731
    %v968 = vpack.c.b16 %v736, %v732
    %v969 = vpack.c.b16 %v737, %v733
    %v970 = vpack.c.b16 %v742, %v738
    %v971 = vpack.c.b16 %v743, %v739
    %v972 = vpack.c.b16 %v744, %v740
    %v973 = vpack.c.b16 %v745, %v741
    %v974 = vpack.c.b16 %v750, %v746
    %v975 = vpack.c.b16 %v751, %v747
    %v976 = vpack.c.b16 %v752, %v748
    %v977 = vpack.c.b16 %v753, %v749
    %v978 = vpack.c.b16 %v758, %v754
    %v979 = vpack.c.b16 %v759, %v755
    %v980 = vpack.c.b16 %v760, %v756
    %v981 = vpack.c.b16 %v761, %v757
    %v982 = vpack.c.b16 %v766, %v762
    %v983 = vpack.c.b16 %v767, %v763
    %v984 = vpack.c.b16 %v768, %v764
    %v985 = vpack.c.b16 %v769, %v765
    %v986 = vpack.c.b16 %v774, %v770
    %v987 = vpack.c.b16 %v775, %v771
    %v988 = vpack.c.b16 %v776, %v772
    %v989 = vpack.c.b16 %v777, %v773
    %v990 = vpack.c.b16 %v782, %v778
    %v991 = vpack.c.b16 %v783, %v779
    %v992 = vpack.c.b16 %v784, %v780
    %v993 = vpack.c.b16 %v785, %v781
    %v994 = vpack.c.b16 %v790, %v786
    %v995 = vpack.c.b16 %v791, %v787
    %v996 = vpack.c.b16 %v792, %v788
    %v997 = vpack.c.b16 %v793, %v789
    %v998 = vpack.c.b16 %v798, %v794
    %v999 = vpack.c.b16 %v799, %v795
    %v1000 = vpack.c.b16 %v800, %v796
    %v1001 = vpack.c.b16 %v801, %v797
    %v1002 = vpack.c.b16 %v806, %v802
    %v1003 = vpack.c.b16 %v807, %v803
    %v1004 = vpack.c.b16 %v808, %v804
    %v1005 = vpack.c.b16 %v809, %v805
    %v1006 = vpack.c.b16 %v814, %v810
    %v1007 = vpack.c.b16 %v815, %v811
    %v1008 = vpack.c.b16 %v816, %v812
    %v1009 = vpack.c.b16 %v817, %v813
    %v1010 = vpack.c.b16 %v822, %v818
    %v1011 = vpack.c.b16 %v823, %v819
    %v1012 = vpack.c.b16 %v824, %v820
    %v1013 = vpack.c.b16 %v825, %v821
    %v1014 = vpack.c.b16 %v830, %v826
    %v1015 = vpack.c.b16 %v831, %v827
    %v1016 = vpack.c.b16 %v832, %v828
    %v1017 = vpack.c.b16 %v833, %v829
    %v1018 = vpack.c.b16 %v838, %v834
    %v1019 = vpack.c.b16 %v839, %v835
    %v1020 = vpack.c.b16 %v840, %v836
    %v1021 = vpack.c.b16 %v841, %v837
    %v1022 = vpack.c.b16 %v846, %v842
    %v1023 = vpack.c.b16 %v847, %v843
    %v1024 = vpack.c.b16 %v848, %v844
    %v1025 = vpack.c.b16 %v849, %v845
    %v1026 = vpack.c.b16 %v854, %v850
    %v1027 = vpack.c.b16 %v855, %v851
    %v1028 = vpack.c.b16 %v856, %v852
    %v1029 = vpack.c.b16 %v857, %v853
    %v1030 = vpack.c.b16 %v862, %v858
    %v1031 = vpack.c.b16 %v863, %v859
    %v1032 = vpack.c.b16 %v864, %v860
    %v1033 = vpack.c.b16 %v865, %v861
    %v1034 = vpack.c.b16 %v870, %v866
    %v1035 = vpack.c.b16 %v871, %v867
    %v1036 = vpack.c.b16 %v872, %v868
    %v1037 = vpack.c.b16 %v873, %v869
    %v1038 = vpack.c.b16 %v878, %v874
    %v1039 = vpack.c.b16 %v879, %v875
    %v1040 = vpack.c.b16 %v880, %v876
    %v1041 = vpack.c.b16 %v881, %v877
    %v1042 = vpack.c.b16 %v886, %v882
    %v1043 = vpack.c.b16 %v887, %v883
    %v1044 = vpack.c.b16 %v888, %v884
    %v1045 = vpack.c.b16 %v889, %v885
    %v1046 = vpack.c.b16 %v894, %v890
    %v1047 = vpack.c.b16 %v895, %v891
    %v1048 = vpack.c.b16 %v896, %v892
    %v1049 = vpack.c.b16 %v897, %v893
    %v1050 = vpack.c.b16 %v902, %v898
    %v1051 = vpack.c.b16 %v903, %v899
    %v1052 = vpack.c.b16 %v904, %v900
    %v1053 = vpack.c.b16 %v905, %v901
    %v1054 = vpack.c.b16 %v910, %v906
    %v1055 = vpack.c.b16 %v911, %v907
    %v1056 = vpack.c.b16 %v912, %v908
    %v1057 = vpack.c.b16 %v913, %v909
    %v1058 = vpack.c.b16 %v918, %v914
    %v1059 = vpack.c.b16 %v919, %v915
    %v1060 = vpack.c.b16 %v920, %v916
    %v1061 = vpack.c.b16 %v921, %v917
    %v1062 = vpack.c.b16 %v926, %v922
    %v1063 = vpack.c.b16 %v927, %v923
    %v1064 = vpack.c.b16 %v928, %v924
    %v1065 = vpack.c.b16 %v929, %v925
    %v1066 = vpack.c.b16 %v934, %v930
    %v1067 = vpack.c.b16 %v935, %v931
    %v1068 = vpack.c.b16 %v936, %v932
    %v1069 = vpack.c.b16 %v937, %v933
    %v1070 = vpack.c.b16 %v942, %v938
    %v1071 = vpack.c.b16 %v943, %v939
    %v1072 = vpack.c.b16 %v944, %v940
    %v1073 = vpack.c.b16 %v945, %v941
    %1202 = vmatprep.subr.bf16.mxu0 %v975
    %1203 = vmatpush1.bf16.msra.mxu0 %v974
    %1204 = vmatprep.subr.bf16.mxu0 %v971
    %1205 = vmatpush1.bf16.msra.mxu0 %v970
    %1206 = vmatprep.subr.bf16.mxu0 %v967
    %1207 = vmatpush1.bf16.msra.mxu0 %v966
    %1208 = vmatprep.subr.bf16.mxu0 %v963
    %1209 = vmatpush1.bf16.msra.mxu0 %v962
    %1210 = vmatprep.subr.bf16.mxu0 %v959
    %1211 = vmatpush1.bf16.msra.mxu0 %v958
    %1212 = vmatprep.subr.bf16.mxu0 %v955
    %1213 = vmatpush1.bf16.msra.mxu0 %v954
    %1214 = vmatprep.subr.bf16.mxu0 %v951
    %1215 = vmatpush1.bf16.msra.mxu0 %v950
    %1216 = vmatprep.subr.bf16.mxu0 %v947
    %1217 = vmatpush1.bf16.msra.mxu0 %v946
    %1218 = vmatprep.subr.bf16.mxu0 %v1007
    %1219 = vmatpush2.bf16.msra.mxu0 %v1006
    %1220 = vmatprep.subr.bf16.mxu0 %v1003
    %1221 = vmatpush2.bf16.msra.mxu0 %v1002
    %1222 = vmatprep.subr.bf16.mxu0 %v999
    %1223 = vmatpush2.bf16.msra.mxu0 %v998
    %1224 = vmatprep.subr.bf16.mxu0 %v995
    %1225 = vmatpush2.bf16.msra.mxu0 %v994
    %1226 = vmatprep.subr.bf16.mxu0 %v991
    %1227 = vmatpush2.bf16.msra.mxu0 %v990
    %1228 = vmatprep.subr.bf16.mxu0 %v987
    %1229 = vmatpush2.bf16.msra.mxu0 %v986
    %1230 = vmatprep.subr.bf16.mxu0 %v983
    %1231 = vmatpush2.bf16.msra.mxu0 %v982
    %1232 = vmatprep.subr.bf16.mxu0 %v979
    %1233 = vmatpush2.bf16.msra.mxu0 %v978
    %1234 = vmatprep.mubr.bf16.mxu0 %v409
    %1235 = vmatmul.mubr.bf16.gmra.mxu0 %v408
    %v1236 = vpop.f32.mrf.mxu0
    %v1237 = vadd.f32 %v545, %v1236
    %v1238 = vpop.f32.mrf.mxu0
    %v1239 = vadd.f32 %v549, %v1238
    %v1240 = vpop.f32.mrf.mxu0
    %v1241 = vpop.f32.mrf.mxu0
    %1242 = vdwg.mxu0
    %1243 = vmatprep.subr.bf16.mxu0 %v1039
    %1244 = vmatpush1.bf16.msra.mxu0 %v1038
    %1245 = vmatprep.subr.bf16.mxu0 %v1035
    %1246 = vmatpush1.bf16.msra.mxu0 %v1034
    %1247 = vmatprep.subr.bf16.mxu0 %v1031
    %1248 = vmatpush1.bf16.msra.mxu0 %v1030
    %1249 = vmatprep.subr.bf16.mxu0 %v1027
    %1250 = vmatpush1.bf16.msra.mxu0 %v1026
    %1251 = vmatprep.subr.bf16.mxu0 %v1023
    %1252 = vmatpush1.bf16.msra.mxu0 %v1022
    %1253 = vmatprep.subr.bf16.mxu0 %v1019
    %1254 = vmatpush1.bf16.msra.mxu0 %v1018
    %1255 = vmatprep.subr.bf16.mxu0 %v1015
    %1256 = vmatpush1.bf16.msra.mxu0 %v1014
    %1257 = vmatprep.subr.bf16.mxu0 %v1011
    %1258 = vmatpush1.bf16.msra.mxu0 %v1010
    %1259 = vmatprep.subr.bf16.mxu0 %v1071
    %1260 = vmatpush2.bf16.msra.mxu0 %v1070
    %1261 = vmatprep.subr.bf16.mxu0 %v1067
    %1262 = vmatpush2.bf16.msra.mxu0 %v1066
    %1263 = vmatprep.subr.bf16.mxu0 %v1063
    %1264 = vmatpush2.bf16.msra.mxu0 %v1062
    %1265 = vmatprep.subr.bf16.mxu0 %v1059
    %1266 = vmatpush2.bf16.msra.mxu0 %v1058
    %1267 = vmatprep.subr.bf16.mxu0 %v1055
    %1268 = vmatpush2.bf16.msra.mxu0 %v1054
    %1269 = vmatprep.subr.bf16.mxu0 %v1051
    %1270 = vmatpush2.bf16.msra.mxu0 %v1050
    %1271 = vmatprep.subr.bf16.mxu0 %v1047
    %1272 = vmatpush2.bf16.msra.mxu0 %v1046
    %1273 = vmatprep.subr.bf16.mxu0 %v1043
    %1274 = vmatpush2.bf16.msra.mxu0 %v1042
    %1275 = vmatprep.mubr.bf16.mxu0 %v411
    %1276 = vmatmul.mubr.bf16.gmra.mxu0 %v410
    %v1277 = vpop.f32.mrf.mxu0
    %v1278 = vadd.f32 %v1237, %v1277
    %v1279 = vpop.f32.mrf.mxu0
    %v1280 = vadd.f32 %v1239, %v1279
    %v1281 = vpop.f32.mrf.mxu0
    %v1282 = vpop.f32.mrf.mxu0
    %1283 = vdwg.mxu0
    %1284 = vmatprep.subr.bf16.mxu0 %v977
    %1285 = vmatpush1.bf16.msra.mxu0 %v976
    %1286 = vmatprep.subr.bf16.mxu0 %v973
    %1287 = vmatpush1.bf16.msra.mxu0 %v972
    %1288 = vmatprep.subr.bf16.mxu0 %v969
    %1289 = vmatpush1.bf16.msra.mxu0 %v968
    %1290 = vmatprep.subr.bf16.mxu0 %v965
    %1291 = vmatpush1.bf16.msra.mxu0 %v964
    %1292 = vmatprep.subr.bf16.mxu0 %v961
    %1293 = vmatpush1.bf16.msra.mxu0 %v960
    %1294 = vmatprep.subr.bf16.mxu0 %v957
    %1295 = vmatpush1.bf16.msra.mxu0 %v956
    %1296 = vmatprep.subr.bf16.mxu0 %v953
    %1297 = vmatpush1.bf16.msra.mxu0 %v952
    %1298 = vmatprep.subr.bf16.mxu0 %v949
    %1299 = vmatpush1.bf16.msra.mxu0 %v948
    %1300 = vmatprep.subr.bf16.mxu0 %v1009
    %1301 = vmatpush2.bf16.msra.mxu0 %v1008
    %1302 = vmatprep.subr.bf16.mxu0 %v1005
    %1303 = vmatpush2.bf16.msra.mxu0 %v1004
    %1304 = vmatprep.subr.bf16.mxu0 %v1001
    %1305 = vmatpush2.bf16.msra.mxu0 %v1000
    %1306 = vmatprep.subr.bf16.mxu0 %v997
    %1307 = vmatpush2.bf16.msra.mxu0 %v996
    %1308 = vmatprep.subr.bf16.mxu0 %v993
    %1309 = vmatpush2.bf16.msra.mxu0 %v992
    %1310 = vmatprep.subr.bf16.mxu0 %v989
    %1311 = vmatpush2.bf16.msra.mxu0 %v988
    %1312 = vmatprep.subr.bf16.mxu0 %v985
    %1313 = vmatpush2.bf16.msra.mxu0 %v984
    %1314 = vmatprep.subr.bf16.mxu0 %v981
    %1315 = vmatpush2.bf16.msra.mxu0 %v980
    %1316 = vmatprep.mubr.bf16.mxu0 %v409
    %1317 = vmatmul.mubr.bf16.gmra.mxu0 %v408
    %v1318 = vpop.f32.mrf.mxu0
    %v1319 = vadd.f32 %v553, %v1318
    %v1320 = vpop.f32.mrf.mxu0
    %v1321 = vadd.f32 %v557, %v1320
    %v1322 = vpop.f32.mrf.mxu0
    %v1323 = vpop.f32.mrf.mxu0
    %1324 = vdwg.mxu0
    %1325 = vmatprep.subr.bf16.mxu0 %v1041
    %1326 = vmatpush1.bf16.msra.mxu0 %v1040
    %1327 = vmatprep.subr.bf16.mxu0 %v1037
    %1328 = vmatpush1.bf16.msra.mxu0 %v1036
    %1329 = vmatprep.subr.bf16.mxu0 %v1033
    %1330 = vmatpush1.bf16.msra.mxu0 %v1032
    %1331 = vmatprep.subr.bf16.mxu0 %v1029
    %1332 = vmatpush1.bf16.msra.mxu0 %v1028
    %1333 = vmatprep.subr.bf16.mxu0 %v1025
    %1334 = vmatpush1.bf16.msra.mxu0 %v1024
    %1335 = vmatprep.subr.bf16.mxu0 %v1021
    %1336 = vmatpush1.bf16.msra.mxu0 %v1020
    %1337 = vmatprep.subr.bf16.mxu0 %v1017
    %1338 = vmatpush1.bf16.msra.mxu0 %v1016
    %1339 = vmatprep.subr.bf16.mxu0 %v1013
    %1340 = vmatpush1.bf16.msra.mxu0 %v1012
    %1341 = vmatprep.subr.bf16.mxu0 %v1073
    %1342 = vmatpush2.bf16.msra.mxu0 %v1072
    %1343 = vmatprep.subr.bf16.mxu0 %v1069
    %1344 = vmatpush2.bf16.msra.mxu0 %v1068
    %1345 = vmatprep.subr.bf16.mxu0 %v1065
    %1346 = vmatpush2.bf16.msra.mxu0 %v1064
    %1347 = vmatprep.subr.bf16.mxu0 %v1061
    %1348 = vmatpush2.bf16.msra.mxu0 %v1060
    %1349 = vmatprep.subr.bf16.mxu0 %v1057
    %1350 = vmatpush2.bf16.msra.mxu0 %v1056
    %1351 = vmatprep.subr.bf16.mxu0 %v1053
    %1352 = vmatpush2.bf16.msra.mxu0 %v1052
    %1353 = vmatprep.subr.bf16.mxu0 %v1049
    %1354 = vmatpush2.bf16.msra.mxu0 %v1048
    %1355 = vmatprep.subr.bf16.mxu0 %v1045
    %1356 = vmatpush2.bf16.msra.mxu0 %v1044
    %1357 = vmatprep.mubr.bf16.mxu0 %v411
    %1358 = vmatmul.mubr.bf16.gmra.mxu0 %v410
    %v1359 = vpop.f32.mrf.mxu0
    %v1360 = vadd.f32 %v1319, %v1359
    %v1361 = vpop.f32.mrf.mxu0
    %v1362 = vadd.f32 %v1321, %v1361
    %v1363 = vpop.f32.mrf.mxu0
    %v1364 = vpop.f32.mrf.mxu0
    %1365 = vdwg.mxu0
    %v1366 = vxor.u32 %v1278, 2147483648
    %v1367 = vxor.u32 %v1280, 2147483648
    %v1368 = vxor.u32 %v1360, 2147483648
    %v1369 = vxor.u32 %v1362, 2147483648
    %v1370 = vmul.f32 %v1366, 1.442695
    %v1371 = vpow.pop %v1370
    %v1372 = vmul.f32 %v1367, 1.442695
    %v1373 = vpow.pop %v1372
    %v1374 = vmul.f32 %v1368, 1.442695
    %v1375 = vpow.pop %v1374
    %v1376 = vmul.f32 %v1369, 1.442695
    %v1377 = vpow.pop %v1376
    %v1378 = vadd.f32 %v1371, 1.0
    %v1379 = vadd.f32 %v1373, 1.0
    %v1380 = vadd.f32 %v1375, 1.0
    %v1381 = vadd.f32 %v1377, 1.0
    %v1382 = vrcp.pop %v1378
    %v1383 = vmul.f32 1.0, %v1382
    %v1384 = vrcp.pop %v1379
    %v1385 = vmul.f32 1.0, %v1384
    %v1386 = vrcp.pop %v1380
    %v1387 = vmul.f32 1.0, %v1386
    %v1388 = vrcp.pop %v1381
    %v1389 = vmul.f32 1.0, %v1388
    %v1390 = vmul.f32 %v1278, %v1383
    %v1391 = vmul.f32 %v1280, %v1385
    %v1392 = vmul.f32 %v1360, %v1387
    %v1393 = vmul.f32 %v1362, %v1389
    %1394 = vst [vmem:[#allocation7] sm:$0xff] %v1390
    %1395 = vst [vmem:[#allocation7 + $0x8] sm:$0xff] %v1391
    %1396 = vst [vmem:[#allocation7 + $0x10] sm:$0xff] %v1392
    %1397 = vst [vmem:[#allocation7 + $0x18] sm:$0xff] %v1393
    // Predicated region
    $region38: #{_diffusion_embedding_forward.1} parent=1 // pred_check
      _
    $region39: #{_diffusion_embedding_forward.1} parent=1 // pred_check_branch
      %1399 = sbr.rel (0) target = $region41
    $region40: #{_diffusion_embedding_forward.1} parent=1 // pred_region
      %s1401 = ssub.s32 512, 512
      %1402 = vsyncadd [#allocation4], %s1401
      %s1404 = sshll.u32 [#allocation7], 4
      %s1405 = int_to_ptr.vmem [resolvable:$true] %s1404
      %1407 = dma.vmem_to_hbm [thread:$0]  %s1405, 512, %s7, [#allocation4]
    $region41: #{_diffusion_embedding_forward.1} parent=1 // pred_fallthru
      _
    // Predicated region
    $region42: #{_diffusion_embedding_forward.1} parent=1 // pred_check
      _
    $region43: #{_diffusion_embedding_forward.1} parent=1 // pred_check_branch
      %1409 = sbr.rel (0) target = $region45
    $region44: #{_diffusion_embedding_forward.1} parent=1 // pred_region
      %1410 = dma.done [#allocation4], 512
    $region45: #{_diffusion_embedding_forward.1} parent=1 // pred_fallthru
      _
    %1411 = vsyncpa [#allocation3], 1
    %1412 = vsyncpa [#allocation6], 1
    %1413 = vsyncpa [#allocation4], 1

</llo_original>
